<compile_context>
chip_gen: v6e
topology: v6e:2x2x1
jax: 0.10.0
libtpu: 0.0.40
codegen_flags: <defaults>
</compile_context>

<pallas_src>
import functools

import jax
import jax.numpy as jnp
from jax.experimental import pallas as pl
from jax.experimental.pallas import tpu as pltpu


def _gram_mse_kernel(i_tbl_ref, j_tbl_ref, xi_ref, xj_ref, si_ref, sj_ref,
                     out_ref, acc_ref, *, scale):
    t = pl.program_id(0)
    k = pl.program_id(1)
    nk = pl.num_programs(1)

    # Reset the per-tile diff accumulator at the start of the k loop.
    @pl.when(k == 0)
    def _():
        acc_ref[...] = jnp.zeros_like(acc_ref)

    # MXU partial gram-difference tile:
    #   acc += Fx[i,k] @ Fx[j,k]^T - Fs[i,k] @ Fs[j,k]^T   (contract last dims)
    dims = (((1,), (1,)), ((), ()))
    acc_ref[...] += (
        jax.lax.dot_general(xi_ref[...], xj_ref[...], dims,
                            preferred_element_type=jnp.float32)
        - jax.lax.dot_general(si_ref[...], sj_ref[...], dims,
                              preferred_element_type=jnp.float32))

    # Finalize this gram tile: weighted, normalized squared-difference scalar.
    @pl.when(k == nk - 1)
    def _():
        w = jnp.where(i_tbl_ref[t] == j_tbl_ref[t],
                      jnp.float32(1.0), jnp.float32(2.0))
        d = acc_ref[...]
        out_ref[0, 0] = w * (jnp.sum(d * d) * scale)


# Streamed input blocks (4 slabs x 2 pipeline buffers) + accumulator budget.
# Kept well under v7x's 64 MiB per-TensorCore VMEM (and trivially under
# v5e / v6e's 128 MiB).
_VMEM_TILE_BUDGET = 24 * 1024 * 1024


def _pick_tiles(rows, length):
    """Pick (row_tile, k_tile): prefer big row tiles, then big lane-dense k tiles."""
    row_cands = [t for t in (512, 256, 128, 64, 32, 16, 8) if rows % t == 0]
    if not row_cands:
        row_cands = [rows]          # full dim is always a legal block
    k_cands = sorted({length} | {t for t in (2048, 1024, 512, 256, 128)
                                 if length % t == 0}, reverse=True)
    for tr in row_cands:
        for tk in k_cands:
            vmem = 4 * 2 * tr * tk * 4 + tr * tr * 4
            if vmem <= _VMEM_TILE_BUDGET:
                return tr, tk
    return row_cands[-1], k_cands[-1]


def _pad_axis(arr, axis, multiple):
    size = arr.shape[axis]
    rem = size % multiple
    if rem == 0:
        return arr, size
    pad = multiple - rem
    widths = [(0, 0)] * arr.ndim
    widths[axis] = (0, pad)
    return jnp.pad(arr, widths), size + pad


def style_loss_forward(x, style):
    """Mirrors StyleLoss.forward: returns (input, loss); loss is the side effect."""
    a, b, c, d = x.shape
    assert style.shape == x.shape, "style features must match input feature shape"
    rows = a * b
    length = c * d

    # (a, b, c, d) -> (a*b, c*d) views.
    fx = x.reshape(rows, length).astype(jnp.float32)
    fs = style.reshape(rows, length).astype(jnp.float32)

    # Zero-pad to hardware-friendly extents.  Extra zero columns do not change
    # F @ F.T; extra zero rows give identical (zero) gram entries for input and
    # style, so the squared difference -- and thus the loss -- is unchanged
    # (the MSE denominator below uses the ORIGINAL row count).
    fx, rows_p = _pad_axis(fx, 0, 8)
    fs, _ = _pad_axis(fs, 0, 8)
    fx, length_p = _pad_axis(fx, 1, 128)
    fs, _ = _pad_axis(fs, 1, 128)

    tr, tk = _pick_tiles(rows_p, length_p)
    nri = rows_p // tr
    nk = length_p // tk

    # Upper-triangular tile table (j >= i).  Consecutive entries share the row
    # tile i, so the pipeline skips the row-slab DMA when the block index
    # repeats (exact reuse whenever nk == 1).
    pairs = [(i, j) for i in range(nri) for j in range(i, nri)]
    i_tbl = jnp.asarray([p[0] for p in pairs], dtype=jnp.int32)
    j_tbl = jnp.asarray([p[1] for p in pairs], dtype=jnp.int32)
    ntiles = len(pairs)

    inv_norm = 1.0 / float(a * b * c * d)     # gram normalization
    inv_nelem = 1.0 / float(rows * rows)      # mse_loss mean (original rows)
    scale = inv_norm * inv_norm * inv_nelem   # folded: (diff*inv_norm)^2 / R^2

    row_map = lambda t, k, it, jt: (it[t], k)   # gram-row slab
    col_map = lambda t, k, it, jt: (jt[t], k)   # gram-col slab
    out_map = lambda t, k, it, jt: (t, 0)       # per-tile partial loss

    partials = pl.pallas_call(
        functools.partial(_gram_mse_kernel, scale=scale),
        out_shape=jax.ShapeDtypeStruct((ntiles, 1), jnp.float32),
        grid_spec=pltpu.PrefetchScalarGridSpec(
            num_scalar_prefetch=2,
            grid=(ntiles, nk),
            in_specs=[
                pl.BlockSpec((tr, tk), row_map),   # input features, row slab
                pl.BlockSpec((tr, tk), col_map),   # input features, col slab
                pl.BlockSpec((tr, tk), row_map),   # style features, row slab
                pl.BlockSpec((tr, tk), col_map),   # style features, col slab
            ],
            out_specs=pl.BlockSpec((1, 1), out_map, memory_space=pltpu.SMEM),
            scratch_shapes=[
                pltpu.VMEM((tr, tr), jnp.float32),   # gram-difference tile
            ],
        ),
        compiler_params=pltpu.CompilerParams(
            # Tile axis is "parallel": each tile writes its own partial-loss
            # scalar, so v7x megacore can shard it across both TensorCores.
            # The contraction axis k must stay sequential ("arbitrary").
            dimension_semantics=("parallel", "arbitrary"),
            vmem_limit_bytes=48 * 1024 * 1024,
        ),
    )(i_tbl, j_tbl, fx, fx, fs, fs)

    loss = jnp.sum(partials)
    return x, loss


def _reference_loss(x, style):
    """Pure-JAX reference of the PyTorch module for correctness checking."""
    a, b, c, d = x.shape
    f = x.reshape(a * b, c * d).astype(jnp.float32)
    gx = (f @ f.T) / (a * b * c * d)
    fs = style.reshape(a * b, c * d).astype(jnp.float32)
    gs = (fs @ fs.T) / (a * b * c * d)
    return jnp.mean((gx - gs) ** 2)


if __name__ == "__main__":
    key = jax.random.PRNGKey(0)
    k_in, k_style = jax.random.split(key)
    # NCHW feature maps: batch=2, channels=4, spatial=16x16.
    x = jax.random.normal(k_in, (2, 4, 16, 16), dtype=jnp.float32)
    style = jax.random.normal(k_style, (2, 4, 16, 16), dtype=jnp.float32)

    out, loss = style_loss_forward(x, style)
    out = jax.block_until_ready(out)
    loss = jax.block_until_ready(loss)

    ref = _reference_loss(x, style)
    assert jnp.allclose(loss, ref, rtol=1e-4, atol=1e-6), (loss, ref)
    assert out.shape == x.shape and jnp.array_equal(out, x)

    print("KERNEL_OK")
</pallas_src>

<mosaic_0001>
module attributes {stable_mosaic.version = 11 : i64} {
  func.func @_gram_mse_kernel(%arg0: i32, %arg1: i32, %arg2: memref<1xi32, #tpu.memory_space<smem>>, %arg3: memref<1xi32, #tpu.memory_space<smem>>, %arg4: memref<8x256xf32, #tpu.memory_space<vmem>>, %arg5: memref<8x256xf32, #tpu.memory_space<vmem>>, %arg6: memref<8x256xf32, #tpu.memory_space<vmem>>, %arg7: memref<8x256xf32, #tpu.memory_space<vmem>>, %arg8: memref<1x1xf32, #tpu.memory_space<smem>>, %arg9: memref<8x8xf32, #tpu.memory_space<vmem>>) attributes {dimension_semantics = [#tpu.dimension_semantics<parallel>, #tpu.dimension_semantics<arbitrary>], iteration_bounds = array<i64: 1, 1>, scalar_prefetch = 2 : i64, scratch_operands = 1 : i64, tpu.core_type = #tpu.core_type<tc>, window_params = [{transform_indices = @transform_0, window_bounds = array<i64: 8, 256>}, {transform_indices = @transform_1, window_bounds = array<i64: 8, 256>}, {transform_indices = @transform_2, window_bounds = array<i64: 8, 256>}, {transform_indices = @transform_3, window_bounds = array<i64: 8, 256>}, {transform_indices = @transform_4, window_bounds = array<i64: 1, 1>}]} {
    %c0_i32 = arith.constant 0 : i32
    %0 = arith.cmpi eq, %arg1, %c0_i32 : i32
    %1 = arith.extui %0 : i1 to i32
    %c0_i32_0 = arith.constant 0 : i32
    %2 = arith.cmpi ne, %1, %c0_i32_0 : i32
    scf.if %2 {
      %cst_15 = arith.constant 0.000000e+00 : f32
      %16 = vector.broadcast %cst_15 : f32 to vector<8x8xf32>
      %c0_16 = arith.constant 0 : index
      %c0_17 = arith.constant 0 : index
      %17 = vector.load %arg9[%c0_16, %c0_17] : memref<8x8xf32, #tpu.memory_space<vmem>>, vector<8x8xf32>
      tpu.vector_store %arg9[%c0_16, %c0_17], %16 {strides = array<i32>} : memref<8x8xf32, #tpu.memory_space<vmem>>, vector<8x8xf32>,
    } else {
    }
    %c0 = arith.constant 0 : index
    %c0_1 = arith.constant 0 : index
    %3 = vector.load %arg9[%c0, %c0_1] : memref<8x8xf32, #tpu.memory_space<vmem>>, vector<8x8xf32>
    %c0_2 = arith.constant 0 : index
    %c0_3 = arith.constant 0 : index
    %4 = vector.load %arg4[%c0_2, %c0_3] : memref<8x256xf32, #tpu.memory_space<vmem>>, vector<8x256xf32>
    %c0_4 = arith.constant 0 : index
    %c0_5 = arith.constant 0 : index
    %5 = vector.load %arg5[%c0_4, %c0_5] : memref<8x256xf32, #tpu.memory_space<vmem>>, vector<8x256xf32>
    %cst = arith.constant dense<0.000000e+00> : vector<8x8xf32>
    %6 = tpu.matmul %4, %5, %cst {dimension_numbers = #tpu.dot_dimension_numbers<[1], [1], [0], [0], [0, 0, 1, 0], [], []>} : vector<8x256xf32>, vector<8x256xf32>, vector<8x8xf32> -> vector<8x8xf32>
    %c0_6 = arith.constant 0 : index
    %c0_7 = arith.constant 0 : index
    %7 = vector.load %arg6[%c0_6, %c0_7] : memref<8x256xf32, #tpu.memory_space<vmem>>, vector<8x256xf32>
    %c0_8 = arith.constant 0 : index
    %c0_9 = arith.constant 0 : index
    %8 = vector.load %arg7[%c0_8, %c0_9] : memref<8x256xf32, #tpu.memory_space<vmem>>, vector<8x256xf32>
    %cst_10 = arith.constant dense<0.000000e+00> : vector<8x8xf32>
    %9 = tpu.matmul %7, %8, %cst_10 {dimension_numbers = #tpu.dot_dimension_numbers<[1], [1], [0], [0], [0, 0, 1, 0], [], []>} : vector<8x256xf32>, vector<8x256xf32>, vector<8x8xf32> -> vector<8x8xf32>
    %10 = arith.subf %6, %9 : vector<8x8xf32>
    %11 = arith.addf %3, %10 : vector<8x8xf32>
    %c0_11 = arith.constant 0 : index
    %c0_12 = arith.constant 0 : index
    %12 = vector.load %arg9[%c0_11, %c0_12] : memref<8x8xf32, #tpu.memory_space<vmem>>, vector<8x8xf32>
    tpu.vector_store %arg9[%c0_11, %c0_12], %11 {strides = array<i32>} : memref<8x8xf32, #tpu.memory_space<vmem>>, vector<8x8xf32>,
    %c0_i32_13 = arith.constant 0 : i32
    %13 = arith.cmpi eq, %arg1, %c0_i32_13 : i32
    %14 = arith.extui %13 : i1 to i32
    %c0_i32_14 = arith.constant 0 : i32
    %15 = arith.cmpi ne, %14, %c0_i32_14 : i32
    scf.if %15 {
      %16 = arith.index_cast %arg0 : i32 to index
      %17 = memref.load %arg2[%16] : memref<1xi32, #tpu.memory_space<smem>>
      %18 = arith.index_cast %arg0 : i32 to index
      %19 = memref.load %arg3[%18] : memref<1xi32, #tpu.memory_space<smem>>
      %20 = arith.cmpi eq, %17, %19 : i32
      %cst_15 = arith.constant 1.000000e+00 : f32
      %cst_16 = arith.constant 2.000000e+00 : f32
      %21 = arith.select %20, %cst_15, %cst_16 : f32
      %c0_17 = arith.constant 0 : index
      %c0_18 = arith.constant 0 : index
      %22 = vector.load %arg9[%c0_17, %c0_18] : memref<8x8xf32, #tpu.memory_space<vmem>>, vector<8x8xf32>
      %23 = arith.mulf %22, %22 : vector<8x8xf32>
      %24 = vector.shape_cast %23 : vector<8x8xf32> to vector<1x8x8xf32>
      %cst_19 = arith.constant dense<0.000000e+00> : vector<1xf32>
      %25 = vector.multi_reduction <add>, %24, %cst_19 [1, 2] : vector<1x8x8xf32> to vector<1xf32>
      %26 = vector.shape_cast %25 : vector<1xf32> to vector<1x1x1xf32>
      %27 = vector.extract %26[0, 0, 0] : f32 from vector<1x1x1xf32>
      %cst_20 = arith.constant 3.7252903E-9 : f32
      %28 = arith.mulf %27, %cst_20 : f32
      %29 = arith.mulf %21, %28 : f32
      %c0_21 = arith.constant 0 : index
      %c0_22 = arith.constant 0 : index
      %30 = memref.load %arg8[%c0_21, %c0_22] : memref<1x1xf32, #tpu.memory_space<smem>>
      memref.store %29, %arg8[%c0_21, %c0_22] : memref<1x1xf32, #tpu.memory_space<smem>>
    } else {
    }
    return
  }
  func.func @transform_0(%arg0: i32, %arg1: i32, %arg2: memref<1xi32, #tpu.memory_space<smem>>, %arg3: memref<1xi32, #tpu.memory_space<smem>>) -> (i32, i32) {
    %0 = arith.index_cast %arg0 : i32 to index
    %1 = memref.load %arg2[%0] : memref<1xi32, #tpu.memory_space<smem>>
    %c0_i32 = arith.constant 0 : i32
    return %1, %arg1 : i32, i32
  }
  func.func @transform_1(%arg0: i32, %arg1: i32, %arg2: memref<1xi32, #tpu.memory_space<smem>>, %arg3: memref<1xi32, #tpu.memory_space<smem>>) -> (i32, i32) {
    %0 = arith.index_cast %arg0 : i32 to index
    %1 = memref.load %arg3[%0] : memref<1xi32, #tpu.memory_space<smem>>
    %c0_i32 = arith.constant 0 : i32
    return %1, %arg1 : i32, i32
  }
  func.func @transform_2(%arg0: i32, %arg1: i32, %arg2: memref<1xi32, #tpu.memory_space<smem>>, %arg3: memref<1xi32, #tpu.memory_space<smem>>) -> (i32, i32) {
    %0 = arith.index_cast %arg0 : i32 to index
    %1 = memref.load %arg2[%0] : memref<1xi32, #tpu.memory_space<smem>>
    %c0_i32 = arith.constant 0 : i32
    return %1, %arg1 : i32, i32
  }
  func.func @transform_3(%arg0: i32, %arg1: i32, %arg2: memref<1xi32, #tpu.memory_space<smem>>, %arg3: memref<1xi32, #tpu.memory_space<smem>>) -> (i32, i32) {
    %0 = arith.index_cast %arg0 : i32 to index
    %1 = memref.load %arg3[%0] : memref<1xi32, #tpu.memory_space<smem>>
    %c0_i32 = arith.constant 0 : i32
    return %1, %arg1 : i32, i32
  }
  func.func @transform_4(%arg0: i32, %arg1: i32, %arg2: memref<1xi32, #tpu.memory_space<smem>>, %arg3: memref<1xi32, #tpu.memory_space<smem>>) -> (i32, i32) {
    %c0_i32 = arith.constant 0 : i32
    %c0_i32_0 = arith.constant 0 : i32
    return %arg0, %c0_i32 : i32, i32
  }
}

</mosaic_0001>

<llo_original>
// kernel: tpu_custom_call.1
$region0: #{tpu_custom_call.1}
  #allocation0 [shape = 'u32[]', space=smem, size = 0x4, offset = 0x4, fixed_abs, tag = 'smem constant byte address 0x4 - core index']
  #allocation1 [shape = 'u32[144,128]{1,0:T(1,128)}', space=vmem, size = 0x12000, scoped, tag = 'internal scratch']
  #allocation2 [shape = 'f32[8,8]{1,0:T(8,128)}', space=vmem, size = 0x1000, scoped, tag = 'scratch operand']
  #allocation3 [shape = 's32[1]{0}', space=sflag, size = 0x4, scoped, tag = 'scoped memory for tpu_custom_call.1']
  #allocation4 [shape = 's32[1]{0:T(128)S(6)}', space=smem, size = 0x200, scoped, tag = 'prefetched SMEM operand 0']
  #allocation5 [shape = 's32[1]{0:T(128)S(6)}', space=smem, size = 0x200, scoped, tag = 'prefetched SMEM operand 1']
  %s0 = inlined_call_operand.<no memory space> [shape: s32[1], index: 0, kind: input, shape index: {}]
  %s1 = inlined_call_operand.<no memory space> [shape: s32[1], index: 1, kind: input, shape index: {}]
  %s2 = inlined_call_operand.hbm [shape: f32[8,256], index: 2, kind: input, shape index: {}]
  %s3 = inlined_call_operand.hbm [shape: f32[8,256], index: 3, kind: input, shape index: {}]
  %s4 = inlined_call_operand.hbm [shape: f32[8,256], index: 4, kind: input, shape index: {}]
  %s5 = inlined_call_operand.hbm [shape: f32[8,256], index: 5, kind: input, shape index: {}]
  %s6 = inlined_call_operand.hbm [shape: f32[1,1], index: 6, kind: output, shape index: {}]
  %s7 = sld [smem:[#allocation0]]
  $region50: #{tpu_custom_call.1} parent=0
    _
  %s9 = ssub.s32 1, %s7
  %s10 = scalar_select 0, %s9, %s7
  %11 = sst [smem:[#allocation4]] %s0
  %12 = sst [smem:[#allocation5]] %s1
  $region1: #{tpu_custom_call.1} parent=0
    #allocation6 [shape = 'u8[8192]{0}', space=vmem, size = 0x2000, scoped, tag = 'input window, operand 2, single buffered']
    #allocation7 [shape = 's32[1]{0}', space=sflag, size = 0x4, scoped, tag = 'scoped memory for tpu_custom_call.1']
    #allocation8 [shape = 's32[1]{0}', space=sflag, size = 0x4, scoped, tag = 'scoped memory for tpu_custom_call.1']
    #allocation9 [shape = 'u8[8192]{0}', space=vmem, size = 0x2000, scoped, tag = 'input window, operand 3, single buffered']
    #allocation10 [shape = 's32[1]{0}', space=sflag, size = 0x4, scoped, tag = 'scoped memory for tpu_custom_call.1']
    #allocation11 [shape = 'u8[8192]{0}', space=vmem, size = 0x2000, scoped, tag = 'input window, operand 4, single buffered']
    #allocation12 [shape = 'u8[8192]{0}', space=vmem, size = 0x2000, scoped, tag = 'input window, operand 5, single buffered']
    #allocation13 [shape = 's32[1]{0}', space=sflag, size = 0x4, scoped, tag = 'scoped memory for tpu_custom_call.1']
    #allocation14 [shape = 'u8[512]{0}', space=smem, size = 0x200, scoped, tag = 'output window, operand 0, single buffered']
    %13 = vsyncpa [#allocation7], 0
    %14 = vsyncpa [#allocation10], 0
    %15 = vsyncpa [#allocation13], 0
    %16 = vsyncpa [#allocation8], 0
    // Predicated region
    $region2: #{tpu_custom_call.1} parent=1 // pred_check
      _
    $region3: #{tpu_custom_call.1} parent=1 // pred_check_branch
      %18 = sbr.rel (0) target = $region5
    $region4: #{tpu_custom_call.1} parent=1 // pred_region
      %s19 = sld [smem:[#allocation4]]
      %s21 = ssub.s32 256, 256
      %22 = vsyncadd [#allocation7], %s21
      %s23 = smul.addr %s19, 2
      %s24 = smul.addr %s23, 128
      %s25 = scalar_lea.hbm %s2, %s24
      %s27 = sshll.u32 [#allocation6], 4
      %s28 = int_to_ptr.vmem [resolvable:$true] %s27
      %30 = dma.hbm_to_vmem [thread:$0]  %s25, 256, %s28, [#allocation7]
    $region5: #{tpu_custom_call.1} parent=1 // pred_fallthru
      _
    // Predicated region
    $region6: #{tpu_custom_call.1} parent=1 // pred_check
      _
    $region7: #{tpu_custom_call.1} parent=1 // pred_check_branch
      %32 = sbr.rel (0) target = $region9
    $region8: #{tpu_custom_call.1} parent=1 // pred_region
      %s33 = sld [smem:[#allocation5]]
      %s35 = ssub.s32 256, 256
      %36 = vsyncadd [#allocation10], %s35
      %s37 = smul.addr %s33, 2
      %s38 = smul.addr %s37, 128
      %s39 = scalar_lea.hbm %s3, %s38
      %s41 = sshll.u32 [#allocation9], 4
      %s42 = int_to_ptr.vmem [resolvable:$true] %s41
      %44 = dma.hbm_to_vmem [thread:$0]  %s39, 256, %s42, [#allocation10]
    $region9: #{tpu_custom_call.1} parent=1 // pred_fallthru
      _
    // Predicated region
    $region10: #{tpu_custom_call.1} parent=1 // pred_check
      _
    $region11: #{tpu_custom_call.1} parent=1 // pred_check_branch
      %46 = sbr.rel (0) target = $region13
    $region12: #{tpu_custom_call.1} parent=1 // pred_region
      %s47 = sld [smem:[#allocation4]]
      %s49 = ssub.s32 256, 256
      %50 = vsyncadd [#allocation10], %s49
      %s51 = smul.addr %s47, 2
      %s52 = smul.addr %s51, 128
      %s53 = scalar_lea.hbm %s4, %s52
      %s55 = sshll.u32 [#allocation11], 4
      %s56 = int_to_ptr.vmem [resolvable:$true] %s55
      %58 = dma.hbm_to_vmem [thread:$0]  %s53, 256, %s56, [#allocation10]
    $region13: #{tpu_custom_call.1} parent=1 // pred_fallthru
      _
    // Predicated region
    $region14: #{tpu_custom_call.1} parent=1 // pred_check
      _
    $region15: #{tpu_custom_call.1} parent=1 // pred_check_branch
      %60 = sbr.rel (0) target = $region17
    $region16: #{tpu_custom_call.1} parent=1 // pred_region
      %s61 = sld [smem:[#allocation5]]
      %s63 = ssub.s32 256, 256
      %64 = vsyncadd [#allocation13], %s63
      %s65 = smul.addr %s61, 2
      %s66 = smul.addr %s65, 128
      %s67 = scalar_lea.hbm %s5, %s66
      %s69 = sshll.u32 [#allocation12], 4
      %s70 = int_to_ptr.vmem [resolvable:$true] %s69
      %72 = dma.hbm_to_vmem [thread:$0]  %s67, 256, %s70, [#allocation13]
    $region17: #{tpu_custom_call.1} parent=1 // pred_fallthru
      _
    // Predicated region
    $region18: #{tpu_custom_call.1} parent=1 // pred_check
      _
    $region19: #{tpu_custom_call.1} parent=1 // pred_check_branch
      %74 = sbr.rel (0) target = $region21
    $region20: #{tpu_custom_call.1} parent=1 // pred_region
      %75 = dma.done [#allocation7], 256
    $region21: #{tpu_custom_call.1} parent=1 // pred_fallthru
      _
    // Predicated region
    $region22: #{tpu_custom_call.1} parent=1 // pred_check
      _
    $region23: #{tpu_custom_call.1} parent=1 // pred_check_branch
      %77 = sbr.rel (0) target = $region25
    $region24: #{tpu_custom_call.1} parent=1 // pred_region
      %78 = dma.done [#allocation10], 256
    $region25: #{tpu_custom_call.1} parent=1 // pred_fallthru
      _
    // Predicated region
    $region26: #{tpu_custom_call.1} parent=1 // pred_check
      _
    $region27: #{tpu_custom_call.1} parent=1 // pred_check_branch
      %80 = sbr.rel (0) target = $region29
    $region28: #{tpu_custom_call.1} parent=1 // pred_region
      %81 = dma.done [#allocation10], 256
    $region29: #{tpu_custom_call.1} parent=1 // pred_fallthru
      _
    // Predicated region
    $region30: #{tpu_custom_call.1} parent=1 // pred_check
      _
    $region31: #{tpu_custom_call.1} parent=1 // pred_check_branch
      %83 = sbr.rel (0) target = $region33
    $region32: #{tpu_custom_call.1} parent=1 // pred_region
      %84 = dma.done [#allocation13], 256
    $region33: #{tpu_custom_call.1} parent=1 // pred_fallthru
      _
    %s85 = sld [smem:[#allocation4]]
    %s86 = sld [smem:[#allocation5]]
    %s87 = sld [smem:[#allocation4]]
    %s88 = sld [smem:[#allocation5]]
    %p89 = scmp.eq.s32.totalorder 0, 0
    // Predicated region
    $region34: #{tpu_custom_call.1} parent=1 // pred_check
      %p90 = pneg %p89
    $region35: #{tpu_custom_call.1} parent=1 // pred_check_branch
      %92 = sbr.rel (%p90) target = $region37
    $region36: #{tpu_custom_call.1} parent=1 // pred_region
      %vm93 = vcmask 64512
      %94 = vst.msk [vmem:[#allocation2] sm:$0xff] %vm93, 0.0
    $region37: #{tpu_custom_call.1} parent=1 // pred_fallthru
      _
    %v95 = vld [vmem:[#allocation2] sm:$0xff]
    %v96 = vld [vmem:[#allocation6] sm:$0xff]
    %v97 = vld [vmem:[#allocation6 + $0x8] sm:$0xff]
    %v98 = vld [vmem:[#allocation9] sm:$0xff]
    %v99 = vld [vmem:[#allocation9 + $0x8] sm:$0xff]
    %100 = vmatprep.subr.mxu0 0.0
    %101 = vmatpush1.xpose.msra.mxu0 0.0
    %102 = vmatprep.subr.mxu0 0.0
    %103 = vmatpush1.xpose.msra.mxu0 0.0
    %104 = vmatprep.subr.mxu0 0.0
    %105 = vmatpush1.xpose.msra.mxu0 0.0
    %106 = vmatprep.subr.mxu0 0.0
    %107 = vmatpush1.xpose.msra.mxu0 0.0
    %108 = vmatprep.subr.mxu0 0.0
    %109 = vmatpush1.xpose.msra.mxu0 0.0
    %110 = vmatprep.subr.mxu0 0.0
    %111 = vmatpush1.xpose.msra.mxu0 0.0
    %112 = vmatprep.subr.mxu0 0.0
    %113 = vmatpush1.xpose.msra.mxu0 0.0
    %114 = vmatprep.subr.mxu0 0.0
    %115 = vmatpush1.xpose.msra.mxu0 0.0
    %116 = vmatprep.subr.mxu0 0.0
    %117 = vmatpush1.xpose.msra.mxu0 0.0
    %118 = vmatprep.subr.mxu0 0.0
    %119 = vmatpush1.xpose.msra.mxu0 0.0
    %120 = vmatprep.subr.mxu0 0.0
    %121 = vmatpush1.xpose.msra.mxu0 0.0
    %122 = vmatprep.subr.mxu0 0.0
    %123 = vmatpush1.xpose.msra.mxu0 0.0
    %124 = vmatprep.subr.mxu0 0.0
    %125 = vmatpush1.xpose.msra.mxu0 0.0
    %126 = vmatprep.subr.mxu0 0.0
    %127 = vmatpush1.xpose.msra.mxu0 0.0
    %128 = vmatprep.subr.mxu0 0.0
    %129 = vmatpush1.xpose.msra.mxu0 0.0
    %130 = vmatprep.subr.mxu0 %v99
    %131 = vmatpush1.xpose.msra.mxu0 %v98
    %132 = vmatprep.subr.mxu0 0.0
    %133 = vmatpush2.xpose.msra.mxu0 0.0
    %134 = vmatprep.subr.mxu0 0.0
    %135 = vmatpush2.xpose.msra.mxu0 0.0
    %136 = vmatprep.subr.mxu0 0.0
    %137 = vmatpush2.xpose.msra.mxu0 0.0
    %138 = vmatprep.subr.mxu0 0.0
    %139 = vmatpush2.xpose.msra.mxu0 0.0
    %140 = vmatprep.subr.mxu0 0.0
    %141 = vmatpush2.xpose.msra.mxu0 0.0
    %142 = vmatprep.subr.mxu0 0.0
    %143 = vmatpush2.xpose.msra.mxu0 0.0
    %144 = vmatprep.subr.mxu0 0.0
    %145 = vmatpush2.xpose.msra.mxu0 0.0
    %146 = vmatprep.subr.mxu0 0.0
    %147 = vmatpush2.xpose.msra.mxu0 0.0
    %148 = vmatprep.subr.mxu0 0.0
    %149 = vmatpush2.xpose.msra.mxu0 0.0
    %150 = vmatprep.subr.mxu0 0.0
    %151 = vmatpush2.xpose.msra.mxu0 0.0
    %152 = vmatprep.subr.mxu0 0.0
    %153 = vmatpush2.xpose.msra.mxu0 0.0
    %154 = vmatprep.subr.mxu0 0.0
    %155 = vmatpush2.xpose.msra.mxu0 0.0
    %156 = vmatprep.subr.mxu0 0.0
    %157 = vmatpush2.xpose.msra.mxu0 0.0
    %158 = vmatprep.subr.mxu0 0.0
    %159 = vmatpush2.xpose.msra.mxu0 0.0
    %160 = vmatprep.subr.mxu0 0.0
    %161 = vmatpush2.xpose.msra.mxu0 0.0
    %162 = vmatprep.subr.mxu0 0.0
    %163 = vmatpush2.xpose.msra.mxu0 0.0
    %164 = vmatprep.mubr.f32.mxu0 %v97
    %165 = vmatmul.mubr.f32.gmra.mxu0 %v96
    %v166 = vpop.f32.mrf.mxu0
    %v167 = vadd.f32 0.0, %v166
    %v168 = vpop.f32.mrf.mxu0
    %169 = vdwg.mxu0
    %v170 = vld [vmem:[#allocation11] sm:$0xff]
    %v171 = vld [vmem:[#allocation11 + $0x8] sm:$0xff]
    %v172 = vld [vmem:[#allocation12] sm:$0xff]
    %v173 = vld [vmem:[#allocation12 + $0x8] sm:$0xff]
    %174 = vmatprep.subr.mxu0 0.0
    %175 = vmatpush1.xpose.msra.mxu0 0.0
    %176 = vmatprep.subr.mxu0 0.0
    %177 = vmatpush1.xpose.msra.mxu0 0.0
    %178 = vmatprep.subr.mxu0 0.0
    %179 = vmatpush1.xpose.msra.mxu0 0.0
    %180 = vmatprep.subr.mxu0 0.0
    %181 = vmatpush1.xpose.msra.mxu0 0.0
    %182 = vmatprep.subr.mxu0 0.0
    %183 = vmatpush1.xpose.msra.mxu0 0.0
    %184 = vmatprep.subr.mxu0 0.0
    %185 = vmatpush1.xpose.msra.mxu0 0.0
    %186 = vmatprep.subr.mxu0 0.0
    %187 = vmatpush1.xpose.msra.mxu0 0.0
    %188 = vmatprep.subr.mxu0 0.0
    %189 = vmatpush1.xpose.msra.mxu0 0.0
    %190 = vmatprep.subr.mxu0 0.0
    %191 = vmatpush1.xpose.msra.mxu0 0.0
    %192 = vmatprep.subr.mxu0 0.0
    %193 = vmatpush1.xpose.msra.mxu0 0.0
    %194 = vmatprep.subr.mxu0 0.0
    %195 = vmatpush1.xpose.msra.mxu0 0.0
    %196 = vmatprep.subr.mxu0 0.0
    %197 = vmatpush1.xpose.msra.mxu0 0.0
    %198 = vmatprep.subr.mxu0 0.0
    %199 = vmatpush1.xpose.msra.mxu0 0.0
    %200 = vmatprep.subr.mxu0 0.0
    %201 = vmatpush1.xpose.msra.mxu0 0.0
    %202 = vmatprep.subr.mxu0 0.0
    %203 = vmatpush1.xpose.msra.mxu0 0.0
    %204 = vmatprep.subr.mxu0 %v173
    %205 = vmatpush1.xpose.msra.mxu0 %v172
    %206 = vmatprep.subr.mxu0 0.0
    %207 = vmatpush2.xpose.msra.mxu0 0.0
    %208 = vmatprep.subr.mxu0 0.0
    %209 = vmatpush2.xpose.msra.mxu0 0.0
    %210 = vmatprep.subr.mxu0 0.0
    %211 = vmatpush2.xpose.msra.mxu0 0.0
    %212 = vmatprep.subr.mxu0 0.0
    %213 = vmatpush2.xpose.msra.mxu0 0.0
    %214 = vmatprep.subr.mxu0 0.0
    %215 = vmatpush2.xpose.msra.mxu0 0.0
    %216 = vmatprep.subr.mxu0 0.0
    %217 = vmatpush2.xpose.msra.mxu0 0.0
    %218 = vmatprep.subr.mxu0 0.0
    %219 = vmatpush2.xpose.msra.mxu0 0.0
    %220 = vmatprep.subr.mxu0 0.0
    %221 = vmatpush2.xpose.msra.mxu0 0.0
    %222 = vmatprep.subr.mxu0 0.0
    %223 = vmatpush2.xpose.msra.mxu0 0.0
    %224 = vmatprep.subr.mxu0 0.0
    %225 = vmatpush2.xpose.msra.mxu0 0.0
    %226 = vmatprep.subr.mxu0 0.0
    %227 = vmatpush2.xpose.msra.mxu0 0.0
    %228 = vmatprep.subr.mxu0 0.0
    %229 = vmatpush2.xpose.msra.mxu0 0.0
    %230 = vmatprep.subr.mxu0 0.0
    %231 = vmatpush2.xpose.msra.mxu0 0.0
    %232 = vmatprep.subr.mxu0 0.0
    %233 = vmatpush2.xpose.msra.mxu0 0.0
    %234 = vmatprep.subr.mxu0 0.0
    %235 = vmatpush2.xpose.msra.mxu0 0.0
    %236 = vmatprep.subr.mxu0 0.0
    %237 = vmatpush2.xpose.msra.mxu0 0.0
    %238 = vmatprep.mubr.f32.mxu0 %v171
    %239 = vmatmul.mubr.f32.gmra.mxu0 %v170
    %v240 = vpop.f32.mrf.mxu0
    %v241 = vadd.f32 0.0, %v240
    %v242 = vpop.f32.mrf.mxu0
    %243 = vdwg.mxu0
    %v244 = vsub.f32 %v167, %v241
    %v245 = vadd.f32 %v95, %v244
    %vm246 = vcmask 64512
    %247 = vst.msk [vmem:[#allocation2] sm:$0xff] %vm246, %v245
    // Predicated region
    $region38: #{tpu_custom_call.1} parent=1 // pred_check
      %p248 = pneg %p89
    $region39: #{tpu_custom_call.1} parent=1 // pred_check_branch
      %250 = sbr.rel (%p248) target = $region41
    $region40: #{tpu_custom_call.1} parent=1 // pred_region
      %s251 = sld [smem:[#allocation4]]
      %s252 = sld [smem:[#allocation5]]
      %p253 = scmp.eq.s32.totalorder %s251, %s252
      %s254 = scalar_select %p253, 1.0, 2.0
      %v255 = vld [vmem:[#allocation2] sm:$0xff]
      %v256 = vmul.f32 %v255, %v255
      %v257 = vsel %vm246, %v256, 0.0
      %258 = vadd.xlane.f32.xlu0 %v257
      %v259 = vpop.xlane.xlu0 %258
      %v260 = vrot.slane %v259, 4
      %v261 = vadd.f32 %v259, %v260
      %v262 = vrot.slane %v261, 2
      %v263 = vadd.f32 %v261, %v262
      %v264 = vrot.slane %v263, 1
      %v265 = vadd.f32 %v263, %v264
      %s266 = vtos %v265
      %s267 = smul.f32 %s266, 3.7252903e-09
      %s268 = smul.f32 %s254, %s267
      %s269 = scalar_lea.smem [#allocation14], 0
      %270 = sst [smem:[%s269]] %s268
    $region41: #{tpu_custom_call.1} parent=1 // pred_fallthru
      _
    // Predicated region
    $region42: #{tpu_custom_call.1} parent=1 // pred_check
      _
    $region43: #{tpu_custom_call.1} parent=1 // pred_check_branch
      %272 = sbr.rel (0) target = $region45
    $region44: #{tpu_custom_call.1} parent=1 // pred_region
      %s274 = ssub.s32 16, 16
      %275 = vsyncadd [#allocation8], %s274
      %278 = dma.smem_to_hbm [#allocation14], 16, %s6, [#allocation8]
    $region45: #{tpu_custom_call.1} parent=1 // pred_fallthru
      _
    // Predicated region
    $region46: #{tpu_custom_call.1} parent=1 // pred_check
      _
    $region47: #{tpu_custom_call.1} parent=1 // pred_check_branch
      %280 = sbr.rel (0) target = $region49
    $region48: #{tpu_custom_call.1} parent=1 // pred_region
      %281 = dma.done [#allocation8], 16
    $region49: #{tpu_custom_call.1} parent=1 // pred_fallthru
      _
    %282 = sfence
    %283 = vsyncpa [#allocation7], 1
    %284 = vsyncpa [#allocation10], 1
    %285 = vsyncpa [#allocation13], 1
    %286 = vsyncpa [#allocation8], 1

</llo_original>
